<compile_context>
chip_gen: v7x
topology: tpu7x:2x2x1
jax: 0.10.0
libtpu: 0.0.40
codegen_flags: <defaults>
</compile_context>

<pallas_src>
import jax
import jax.numpy as jnp
from jax.experimental import pallas as pl
from jax.experimental.pallas import tpu as pltpu

# add_noise constants (test=True branch)
SIG_SHOT = (0.01 - 0.0001) / 2.0   # 0.00495
SIG_READ = (0.03 - 0.001) / 2.0    # 0.0145


def uniform_shutter_kernel(v_ref, shut_ref, n_shot_ref, n_read_ref, o_ref):
    # v_ref:      (1, T, HW)  bf16 video slab for this batch element
    # shut_ref:   (T, HW)     bf16 binary shutter pattern (constant across grid)
    # n_shot_ref: (1, 1, HW)  f32 standard-normal noise (shot)
    # n_read_ref: (1, 1, HW)  f32 standard-normal noise (read)
    # o_ref:      (1, 1, HW)  f32 measurement
    v = v_ref[...].astype(jnp.float32)          # upcast: compute in f32 (v5e-safe)
    shut = shut_ref[...].astype(jnp.float32)

    # measurement = sum over time of (video * shutter)   -> (1, 1, HW)
    meas = jnp.sum(v * shut[None, :, :], axis=1, keepdims=True)

    # post_process divide by exp_time and add_noise ratio exp_time/8 cancel:
    #   (meas / exp_t) * (exp_t / 8) == meas * 0.125
    img = meas * 0.125

    shot = jnp.sqrt(img) * SIG_SHOT * n_shot_ref[...]   # img >= 0, sqrt is safe
    read = SIG_READ * n_read_ref[...]

    # clamp to [0, 1]
    o_ref[...] = jnp.clip(img + shot + read, 0.0, 1.0)


def uniform_shutter_forward(video_block, shutter, noise_shot, noise_read):
    """video_block: (B,T,H,W) f32, shutter: (T,H,W), noise_*: (B,1,H,W) f32."""
    B, T, H, W = video_block.shape
    HW = H * W

    # Lane-dense, low-traffic presentation of the inputs.
    v = video_block.astype(jnp.bfloat16).reshape(B, T, HW)
    s = shutter.astype(jnp.bfloat16).reshape(T, HW)          # binary -> exact in bf16
    ns = noise_shot.astype(jnp.float32).reshape(B, 1, HW)
    nr = noise_read.astype(jnp.float32).reshape(B, 1, HW)

    out = pl.pallas_call(
        uniform_shutter_kernel,
        out_shape=jax.ShapeDtypeStruct((B, 1, HW), jnp.float32),
        grid_spec=pltpu.PrefetchScalarGridSpec(
            num_scalar_prefetch=0,
            grid=(B,),
            in_specs=[
                pl.BlockSpec((1, T, HW), lambda b: (b, 0, 0)),    # video (bf16)
                pl.BlockSpec((T, HW), lambda b: (0, 0)),          # shutter (bf16)
                pl.BlockSpec((1, 1, HW), lambda b: (b, 0, 0)),    # shot noise
                pl.BlockSpec((1, 1, HW), lambda b: (b, 0, 0)),    # read noise
            ],
            out_specs=pl.BlockSpec((1, 1, HW), lambda b: (b, 0, 0)),
        ),
        compiler_params=pltpu.CompilerParams(
            dimension_semantics=("parallel",)),   # >=2 steps -> sharded on v7x's 2 TCs
    )(v, s, ns, nr)

    return out.reshape(B, 1, H, W)


def make_uniform_shutter(key, block_size):
    """Deterministic re-implementation of Uniform.__init__ parameter setup."""
    T, H, W = block_size
    lengths = jax.random.randint(key, (H, W), 1, T + 1, dtype=jnp.int32)   # (H, W)
    # shutter[t, y, x] = 1 if t < lengths[y, x]
    t_idx = jnp.arange(T, dtype=jnp.int32)[:, None, None]
    shutter = (t_idx < lengths[None, :, :]).astype(jnp.float32)            # (T, H, W)
    return lengths, shutter


if __name__ == "__main__":
    B, T, H, W = 2, 8, 16, 16
    block_size = (T, H, W)

    key = jax.random.PRNGKey(0)
    k_len, k_vid, k_shot, k_read = jax.random.split(key, 4)

    lengths, shutter = make_uniform_shutter(k_len, block_size)

    # video in [0, 1], like normalized frames
    video_block = jax.random.uniform(k_vid, (B, T, H, W), dtype=jnp.float32)

    # deterministic standard-normal noise (replaces torch.randn_like)
    noise_shot = jax.random.normal(k_shot, (B, 1, H, W), dtype=jnp.float32)
    noise_read = jax.random.normal(k_read, (B, 1, H, W), dtype=jnp.float32)

    out = uniform_shutter_forward(video_block, shutter, noise_shot, noise_read)
    out = jax.block_until_ready(out)

    # sanity checks
    assert out.shape == (B, 1, H, W)
    assert bool(jnp.all(out >= 0.0)) and bool(jnp.all(out <= 1.0))

    print("KERNEL_OK")
</pallas_src>

<mosaic_0001>
module attributes {stable_mosaic.version = 11 : i64} {
  func.func @uniform_shutter_kernel(%arg0: i32, %arg1: memref<1x8x256xbf16, #tpu.memory_space<vmem>>, %arg2: memref<8x256xbf16, #tpu.memory_space<vmem>>, %arg3: memref<1x1x256xf32, #tpu.memory_space<vmem>>, %arg4: memref<1x1x256xf32, #tpu.memory_space<vmem>>, %arg5: memref<1x1x256xf32, #tpu.memory_space<vmem>>) attributes {dimension_semantics = [#tpu.dimension_semantics<parallel>], iteration_bounds = array<i64: 2>, scalar_prefetch = 0 : i64, scratch_operands = 0 : i64, tpu.core_type = #tpu.core_type<tc>, window_params = [{transform_indices = @transform_0, window_bounds = array<i64: 1, 8, 256>}, {pipeline_mode = #tpu.pipeline_mode<synchronous>, transform_indices = @transform_1, window_bounds = array<i64: 8, 256>}, {transform_indices = @transform_2, window_bounds = array<i64: 1, 1, 256>}, {transform_indices = @transform_3, window_bounds = array<i64: 1, 1, 256>}, {transform_indices = @transform_4, window_bounds = array<i64: 1, 1, 256>}]} {
    %c0 = arith.constant 0 : index
    %c0_0 = arith.constant 0 : index
    %c0_1 = arith.constant 0 : index
    %0 = vector.load %arg1[%c0, %c0_0, %c0_1] : memref<1x8x256xbf16, #tpu.memory_space<vmem>>, vector<1x8x256xbf16>
    %1 = arith.extf %0 : vector<1x8x256xbf16> to vector<1x8x256xf32>
    %c0_2 = arith.constant 0 : index
    %c0_3 = arith.constant 0 : index
    %2 = vector.load %arg2[%c0_2, %c0_3] : memref<8x256xbf16, #tpu.memory_space<vmem>>, vector<8x256xbf16>
    %3 = arith.extf %2 : vector<8x256xbf16> to vector<8x256xf32>
    %4 = vector.shape_cast %3 : vector<8x256xf32> to vector<1x8x256xf32>
    %5 = arith.mulf %1, %4 : vector<1x8x256xf32>
    %cst = arith.constant dense<0.000000e+00> : vector<1x256xf32>
    %6 = vector.multi_reduction <add>, %5, %cst [1] : vector<1x8x256xf32> to vector<1x256xf32>
    %7 = vector.shape_cast %6 : vector<1x256xf32> to vector<1x1x256xf32>
    %cst_4 = arith.constant 1.250000e-01 : f32
    %8 = vector.broadcast %cst_4 : f32 to vector<1x1x256xf32>
    %9 = arith.mulf %7, %8 : vector<1x1x256xf32>
    %10 = math.sqrt %9 : vector<1x1x256xf32>
    %cst_5 = arith.constant 4.950000e-03 : f32
    %11 = vector.broadcast %cst_5 : f32 to vector<1x1x256xf32>
    %12 = arith.mulf %10, %11 : vector<1x1x256xf32>
    %c0_6 = arith.constant 0 : index
    %c0_7 = arith.constant 0 : index
    %c0_8 = arith.constant 0 : index
    %13 = vector.load %arg3[%c0_6, %c0_7, %c0_8] : memref<1x1x256xf32, #tpu.memory_space<vmem>>, vector<1x1x256xf32>
    %14 = arith.mulf %12, %13 : vector<1x1x256xf32>
    %c0_9 = arith.constant 0 : index
    %c0_10 = arith.constant 0 : index
    %c0_11 = arith.constant 0 : index
    %15 = vector.load %arg4[%c0_9, %c0_10, %c0_11] : memref<1x1x256xf32, #tpu.memory_space<vmem>>, vector<1x1x256xf32>
    %cst_12 = arith.constant 1.450000e-02 : f32
    %16 = vector.broadcast %cst_12 : f32 to vector<1x1x256xf32>
    %17 = arith.mulf %16, %15 : vector<1x1x256xf32>
    %18 = arith.addf %9, %14 : vector<1x1x256xf32>
    %19 = arith.addf %18, %17 : vector<1x1x256xf32>
    %cst_13 = arith.constant 0.000000e+00 : f32
    %cst_14 = arith.constant 1.000000e+00 : f32
    %20 = vector.broadcast %cst_13 : f32 to vector<1x1x256xf32>
    %21 = arith.maximumf %20, %19 : vector<1x1x256xf32>
    %22 = vector.broadcast %cst_14 : f32 to vector<1x1x256xf32>
    %23 = arith.minimumf %22, %21 : vector<1x1x256xf32>
    %c0_15 = arith.constant 0 : index
    %c0_16 = arith.constant 0 : index
    %c0_17 = arith.constant 0 : index
    %24 = vector.load %arg5[%c0_15, %c0_16, %c0_17] : memref<1x1x256xf32, #tpu.memory_space<vmem>>, vector<1x1x256xf32>
    tpu.vector_store %arg5[%c0_15, %c0_16, %c0_17], %23 {strides = array<i32>} : memref<1x1x256xf32, #tpu.memory_space<vmem>>, vector<1x1x256xf32>,
    return
  }
  func.func @transform_0(%arg0: i32) -> (i32, i32, i32) {
    %c0_i32 = arith.constant 0 : i32
    %c0_i32_0 = arith.constant 0 : i32
    %c0_i32_1 = arith.constant 0 : i32
    return %arg0, %c0_i32, %c0_i32_0 : i32, i32, i32
  }
  func.func @transform_1(%arg0: i32) -> (i32, i32) {
    %c0_i32 = arith.constant 0 : i32
    %c0_i32_0 = arith.constant 0 : i32
    %c0_i32_1 = arith.constant 0 : i32
    return %c0_i32, %c0_i32_0 : i32, i32
  }
  func.func @transform_2(%arg0: i32) -> (i32, i32, i32) {
    %c0_i32 = arith.constant 0 : i32
    %c0_i32_0 = arith.constant 0 : i32
    %c0_i32_1 = arith.constant 0 : i32
    return %arg0, %c0_i32, %c0_i32_0 : i32, i32, i32
  }
  func.func @transform_3(%arg0: i32) -> (i32, i32, i32) {
    %c0_i32 = arith.constant 0 : i32
    %c0_i32_0 = arith.constant 0 : i32
    %c0_i32_1 = arith.constant 0 : i32
    return %arg0, %c0_i32, %c0_i32_0 : i32, i32, i32
  }
  func.func @transform_4(%arg0: i32) -> (i32, i32, i32) {
    %c0_i32 = arith.constant 0 : i32
    %c0_i32_0 = arith.constant 0 : i32
    %c0_i32_1 = arith.constant 0 : i32
    return %arg0, %c0_i32, %c0_i32_0 : i32, i32, i32
  }
}

</mosaic_0001>

<llo_original>
// kernel: tpu_custom_call.1
$region0: #{tpu_custom_call.1}
  #allocation0 [shape = 'u32[]', space=smem, size = 0x4, offset = 0x4, fixed_abs, tag = 'smem constant byte address 0x4 - core index']
  #allocation1 [shape = 'u32[144,128]{1,0:T(1,128)}', space=vmem, size = 0x12000, scoped, tag = 'internal scratch']
  %s0 = inlined_call_operand.hbm [shape: bf16[2,8,256], index: 0, kind: input, shape index: {}]
  %s1 = inlined_call_operand.hbm [shape: bf16[8,256], index: 1, kind: input, shape index: {}]
  %s2 = inlined_call_operand.vmem [shape: f32[2,1,256], index: 2, kind: input, shape index: {}]
  %s3 = inlined_call_operand.vmem [shape: f32[2,1,256], index: 3, kind: input, shape index: {}]
  %s4 = inlined_call_operand.hbm [shape: f32[2,1,256], index: 4, kind: output, shape index: {}]
  %s5 = sld [smem:[#allocation0]]
  $region57: #{tpu_custom_call.1} parent=0
    _
  %s7 = ssub.s32 1, %s5
  %s8 = scalar_select 0, %s7, %s5
  $region1: #{tpu_custom_call.1} parent=0
    #allocation2 [shape = 'u8[8192]{0}', space=vmem, size = 0x2000, scoped, tag = 'input window, operand 0']
    #allocation3 [shape = 's32[2]{0}', space=sflag, size = 0x8, scoped, tag = 'scoped memory for tpu_custom_call.1']
    #allocation4 [shape = 's32[2]{0}', space=sflag, size = 0x8, scoped, tag = 'scoped memory for tpu_custom_call.1']
    #allocation5 [shape = 'u8[4096]{0}', space=vmem, size = 0x1000, scoped, tag = 'input window, operand 1, single buffered']
    #allocation6 [shape = 's32[1]{0}', space=sflag, size = 0x4, scoped, tag = 'scoped memory for tpu_custom_call.1']
    #allocation7 [shape = 'u8[2048]{0}', space=vmem, size = 0x800, scoped, tag = 'output window, operand 0']
    %9 = vsyncpa [#allocation3], 0
    %s10 = scalar_lea.sflag [#allocation3], 1
    %11 = vsyncpa %s10, 0
    %12 = vsyncpa [#allocation6], 0
    %13 = vsyncpa [#allocation4], 0
    %s14 = scalar_lea.sflag [#allocation4], 1
    %15 = vsyncpa %s14, 0
    loop: start=0, step=1, limit=4
    $region2: #{tpu_custom_call.1} parent=1 // loop_pre_header
      _
    $region3: #{tpu_custom_call.1} parent=1 // loop_header
      %s17 = sphi 0, %s21
      %p18 = scmp.ge.s32.totalorder %s17, 4
      %s27 = sphi 0, %s29
      %s30 = sphi 0, %s27
      %s31 = sphi 0, %s30
      %s47 = sphi 0, %s31
      %s51 = sphi 0, %s51
      %s53 = sphi 0, %s51
      %s54 = sphi 0, %s53
      %s68 = sphi 0, %s54
      %s74 = sphi 0, %s76
      %s77 = sphi 0, %s74
      %s78 = sphi 0, %s77
      %s94 = sphi 0, %s78
      %s100 = sphi 0, %s102
      %s103 = sphi 0, %s100
      %s104 = sphi 0, %s103
      %s120 = sphi 0, %s104
      %s126 = sphi 0, %s128
      %s129 = sphi 0, %s126
      %s130 = sphi 0, %s129
      %s146 = sphi 0, %s130
    $region4: #{tpu_custom_call.1} parent=1 // loop_header_branch
      %20 = sbr.rel (%p18) target = $region8
    $region5: #{tpu_custom_call.1} parent=1 // loop_body
      %s22 = ssub.s32 %s17, 1
      %s23 = ssub.s32 %s17, 2
      %s24 = sadd.s32 %s17, 1
      %s25 = ssub.s32 %s17, %s24
      %p26 = scmp.eq.s32.totalorder %s25, 0
      %s28 = sadd.s32 %s27, 1
      %s29 = scalar_select %p26, %s27, %s28
      %p32 = pneg %p26
      %p33 = scmp.eq.s32.totalorder %s17, 1
      %p34 = por %p32, %p33
      %p35 = scmp.ne.s32.totalorder %s27, %s30
      %p36 = scmp.eq.s32.totalorder %s17, 0
      %p37 = por %p35, %p36
      %p38 = scmp.ne.s32.totalorder %s27, %s30
      %p39 = scmp.eq.s32.totalorder %s22, 1
      %p40 = por %p38, %p39
      %p41 = scmp.ne.s32.totalorder %s30, %s31
      %p42 = scmp.eq.s32.totalorder %s22, 0
      %p43 = por %p41, %p42
      %p44 = scmp.ne.s32.totalorder %s30, %s31
      %p45 = scmp.eq.s32.totalorder %s23, 1
      %p46 = por %p44, %p45
      %p48 = scmp.ne.s32.totalorder %s31, %s47
      %p49 = scmp.eq.s32.totalorder %s23, 0
      %p50 = por %p48, %p49
      %s52 = sadd.s32 %s51, 1
      %p55 = scmp.eq.s32.totalorder %s17, 1
      %p56 = scmp.ne.s32.totalorder %s51, %s53
      %p57 = scmp.eq.s32.totalorder %s17, 0
      %p58 = por %p56, %p57
      %p59 = scmp.ne.s32.totalorder %s51, %s53
      %p60 = scmp.eq.s32.totalorder %s22, 1
      %p61 = por %p59, %p60
      %p62 = scmp.ne.s32.totalorder %s53, %s54
      %p63 = scmp.eq.s32.totalorder %s22, 0
      %p64 = por %p62, %p63
      %p65 = scmp.ne.s32.totalorder %s53, %s54
      %p66 = scmp.eq.s32.totalorder %s23, 1
      %p67 = por %p65, %p66
      %p69 = scmp.ne.s32.totalorder %s54, %s68
      %p70 = scmp.eq.s32.totalorder %s23, 0
      %p71 = por %p69, %p70
      %s72 = ssub.s32 %s17, %s24
      %p73 = scmp.eq.s32.totalorder %s72, 0
      %s75 = sadd.s32 %s74, 1
      %s76 = scalar_select %p73, %s74, %s75
      %p79 = pneg %p73
      %p80 = scmp.eq.s32.totalorder %s17, 1
      %p81 = por %p79, %p80
      %p82 = scmp.ne.s32.totalorder %s74, %s77
      %p83 = scmp.eq.s32.totalorder %s17, 0
      %p84 = por %p82, %p83
      %p85 = scmp.ne.s32.totalorder %s74, %s77
      %p86 = scmp.eq.s32.totalorder %s22, 1
      %p87 = por %p85, %p86
      %p88 = scmp.ne.s32.totalorder %s77, %s78
      %p89 = scmp.eq.s32.totalorder %s22, 0
      %p90 = por %p88, %p89
      %p91 = scmp.ne.s32.totalorder %s77, %s78
      %p92 = scmp.eq.s32.totalorder %s23, 1
      %p93 = por %p91, %p92
      %p95 = scmp.ne.s32.totalorder %s78, %s94
      %p96 = scmp.eq.s32.totalorder %s23, 0
      %p97 = por %p95, %p96
      %s98 = ssub.s32 %s17, %s24
      %p99 = scmp.eq.s32.totalorder %s98, 0
      %s101 = sadd.s32 %s100, 1
      %s102 = scalar_select %p99, %s100, %s101
      %p105 = pneg %p99
      %p106 = scmp.eq.s32.totalorder %s17, 1
      %p107 = por %p105, %p106
      %p108 = scmp.ne.s32.totalorder %s100, %s103
      %p109 = scmp.eq.s32.totalorder %s17, 0
      %p110 = por %p108, %p109
      %p111 = scmp.ne.s32.totalorder %s100, %s103
      %p112 = scmp.eq.s32.totalorder %s22, 1
      %p113 = por %p111, %p112
      %p114 = scmp.ne.s32.totalorder %s103, %s104
      %p115 = scmp.eq.s32.totalorder %s22, 0
      %p116 = por %p114, %p115
      %p117 = scmp.ne.s32.totalorder %s103, %s104
      %p118 = scmp.eq.s32.totalorder %s23, 1
      %p119 = por %p117, %p118
      %p121 = scmp.ne.s32.totalorder %s104, %s120
      %p122 = scmp.eq.s32.totalorder %s23, 0
      %p123 = por %p121, %p122
      %s124 = ssub.s32 %s17, %s24
      %p125 = scmp.eq.s32.totalorder %s124, 0
      %s127 = sadd.s32 %s126, 1
      %s128 = scalar_select %p125, %s126, %s127
      %p131 = pneg %p125
      %p132 = scmp.eq.s32.totalorder %s17, 1
      %p133 = por %p131, %p132
      %p134 = scmp.ne.s32.totalorder %s126, %s129
      %p135 = scmp.eq.s32.totalorder %s17, 0
      %p136 = por %p134, %p135
      %p137 = scmp.ne.s32.totalorder %s126, %s129
      %p138 = scmp.eq.s32.totalorder %s22, 1
      %p139 = por %p137, %p138
      %p140 = scmp.ne.s32.totalorder %s129, %s130
      %p141 = scmp.eq.s32.totalorder %s22, 0
      %p142 = por %p140, %p141
      %p143 = scmp.ne.s32.totalorder %s129, %s130
      %p144 = scmp.eq.s32.totalorder %s23, 1
      %p145 = por %p143, %p144
      %p147 = scmp.ne.s32.totalorder %s130, %s146
      %p148 = scmp.eq.s32.totalorder %s23, 0
      %p149 = por %p147, %p148
      %p150 = scmp.le.s32.totalorder 1, %s17
      %p151 = scmp.lt.s32.totalorder %s17, 3
      %p152 = pnand %p150, %p151
      %p153 = pneg %p152
      // Predicated region
      $region9: #{tpu_custom_call.1} parent=5 // pred_check
        _
      $region10: #{tpu_custom_call.1} parent=5 // pred_check_branch
        %155 = sbr.rel (%p152) target = $region12
      $region11: #{tpu_custom_call.1} parent=5 // pred_region
        %s156 = ssub.s32 %s17, 1
        // Predicated region
        $region13: #{tpu_custom_call.1} parent=11 // pred_check
          %p157 = pneg %p64
        $region14: #{tpu_custom_call.1} parent=11 // pred_check_branch
          %159 = sbr.rel (%p157) target = $region16
        $region15: #{tpu_custom_call.1} parent=11 // pred_region
          %s161 = ssub.s32 128, 128
          %162 = vsyncadd [#allocation6], %s161
          %s164 = sshll.u32 [#allocation5], 4
          %s165 = int_to_ptr.vmem [resolvable:$true] %s164
          %167 = dma.hbm_to_vmem [thread:$0]  %s1, 128, %s165, [#allocation6]
        $region16: #{tpu_custom_call.1} parent=11 // pred_fallthru
          _
      $region12: #{tpu_custom_call.1} parent=5 // pred_fallthru
        _
      %p168 = scmp.lt.s32.totalorder %s17, 2
      // Predicated region
      $region17: #{tpu_custom_call.1} parent=5 // pred_check
        %p169 = pneg %p168
      $region18: #{tpu_custom_call.1} parent=5 // pred_check_branch
        %171 = sbr.rel (%p169) target = $region20
      $region19: #{tpu_custom_call.1} parent=5 // pred_region
        // Predicated region
        $region21: #{tpu_custom_call.1} parent=19 // pred_check
          %p172 = pneg %p37
        $region22: #{tpu_custom_call.1} parent=19 // pred_check_branch
          %174 = sbr.rel (%p172) target = $region24
        $region23: #{tpu_custom_call.1} parent=19 // pred_region
          %s175 = sand.u32 %s27, 1
          %s176 = scalar_lea.sflag [#allocation3], %s175
          %s177 = sand.u32 %s27, 1
          %s178 = smul.addr %s177, 8
          %s179 = scalar_lea.vmem [#allocation2], %s178
          %s181 = ssub.s32 128, 128
          %182 = vsyncadd %s176, %s181
          %s183 = smul.addr %s17, 2
          %s184 = smul.addr %s183, 64
          %s185 = scalar_lea.hbm %s0, %s184
          %s187 = sshll.u32 %s179, 4
          %s188 = int_to_ptr.vmem [resolvable:$true] %s187
          %190 = dma.hbm_to_vmem [thread:$0]  %s185, 128, %s188, %s176
        $region24: #{tpu_custom_call.1} parent=19 // pred_fallthru
          _
        // Predicated region
        $region25: #{tpu_custom_call.1} parent=19 // pred_check
          %p191 = pneg %p84
        $region26: #{tpu_custom_call.1} parent=19 // pred_check_branch
          %193 = sbr.rel (%p191) target = $region28
        $region27: #{tpu_custom_call.1} parent=19 // pred_region
          %p194 = scmp.lt.s32.totalorder %s17, 1
          %s195 = scalar_select %p194, %s17, 1
          %s196 = smul.addr %s195, 2
          %s197 = scalar_lea.vmem %s2, %s196
        $region28: #{tpu_custom_call.1} parent=19 // pred_fallthru
          _
        // Predicated region
        $region29: #{tpu_custom_call.1} parent=19 // pred_check
          %p198 = pneg %p110
        $region30: #{tpu_custom_call.1} parent=19 // pred_check_branch
          %200 = sbr.rel (%p198) target = $region32
        $region31: #{tpu_custom_call.1} parent=19 // pred_region
          %p201 = scmp.lt.s32.totalorder %s17, 1
          %s202 = scalar_select %p201, %s17, 1
          %s203 = smul.addr %s202, 2
          %s204 = scalar_lea.vmem %s3, %s203
        $region32: #{tpu_custom_call.1} parent=19 // pred_fallthru
          _
      $region20: #{tpu_custom_call.1} parent=5 // pred_fallthru
        _
      %p205 = scmp.le.s32.totalorder 1, %s17
      %p206 = scmp.lt.s32.totalorder %s17, 3
      %p207 = pnand %p205, %p206
      %p208 = pneg %p207
      // Predicated region
      $region33: #{tpu_custom_call.1} parent=5 // pred_check
        _
      $region34: #{tpu_custom_call.1} parent=5 // pred_check_branch
        %210 = sbr.rel (%p207) target = $region36
      $region35: #{tpu_custom_call.1} parent=5 // pred_region
        %s211 = ssub.s32 %s17, 1
        %s212 = sand.u32 %s30, 1
        %s213 = scalar_lea.sflag [#allocation3], %s212
        %s214 = sand.u32 %s30, 1
        %s215 = smul.addr %s214, 8
        %s216 = scalar_lea.vmem [#allocation2], %s215
        // Predicated region
        $region37: #{tpu_custom_call.1} parent=35 // pred_check
          %p217 = pneg %p43
        $region38: #{tpu_custom_call.1} parent=35 // pred_check_branch
          %219 = sbr.rel (%p217) target = $region40
        $region39: #{tpu_custom_call.1} parent=35 // pred_region
          %220 = dma.done %s213, 128
        $region40: #{tpu_custom_call.1} parent=35 // pred_fallthru
          _
        // Predicated region
        $region41: #{tpu_custom_call.1} parent=35 // pred_check
          %p221 = pneg %p64
        $region42: #{tpu_custom_call.1} parent=35 // pred_check_branch
          %223 = sbr.rel (%p221) target = $region44
        $region43: #{tpu_custom_call.1} parent=35 // pred_region
          %224 = dma.done [#allocation6], 128
        $region44: #{tpu_custom_call.1} parent=35 // pred_fallthru
          _
        %s225 = sand.u32 %s30, 1
        %s226 = scalar_lea.sflag [#allocation3], %s225
        %s227 = sand.u32 %s30, 1
        %s228 = smul.addr %s227, 8
        %s229 = scalar_lea.vmem [#allocation2], %s228
        %p230 = pneg %p43
        %p231 = pneg %p40
        %p232 = pneg %p64
        %p233 = pneg %p61
        %p234 = scmp.lt.s32.totalorder %s22, 1
        %s235 = scalar_select %p234, %s22, 1
        %s236 = smul.addr %s235, 2
        %s237 = scalar_lea.vmem %s2, %s236
        %p238 = pneg %p90
        %p239 = pneg %p87
        %p240 = scmp.lt.s32.totalorder %s22, 1
        %s241 = scalar_select %p240, %s22, 1
        %s242 = smul.addr %s241, 2
        %s243 = scalar_lea.vmem %s3, %s242
        %p244 = pneg %p116
        %p245 = pneg %p113
        %p246 = pneg %p142
        %p247 = pneg %p139
        %s248 = sand.u32 %s129, 1
        %s249 = scalar_lea.sflag [#allocation4], %s248
        %s250 = sand.u32 %s129, 1
        %s251 = smul.addr %s250, 2
        %s252 = scalar_lea.vmem [#allocation7], %s251
        %p253 = scmp.lt.s32.totalorder %s22, 1
        %s254 = scalar_select %p253, %s22, 1
        %s255 = smul.addr %s254, 2
        %s256 = scalar_lea.vmem %s2, %s255
        %p257 = scmp.lt.s32.totalorder %s22, 1
        %s258 = scalar_select %p257, %s22, 1
        %s259 = smul.addr %s258, 2
        %s260 = scalar_lea.vmem %s3, %s259
        %v261 = vld [vmem:[%s216] sm:$0xff]
        %v262 = vunpack.c.l.bf16 %v261
        %v263 = vunpack.c.h.bf16 %v261
        %v264 = vld [vmem:[#allocation5] sm:$0xff]
        %v265 = vunpack.c.l.bf16 %v264
        %v266 = vunpack.c.h.bf16 %v264
        %v267 = vmul.f32 %v262, %v265
        %v268 = vmul.f32 %v263, %v266
        %v269 = vrot.slane %v267, 4
        %v270 = vadd.f32 %v267, %v269
        %v271 = vrot.slane %v270, 2
        %v272 = vadd.f32 %v270, %v271
        %v273 = vrot.slane %v272, 1
        %v274 = vadd.f32 %v272, %v273
        %v275 = vrot.slane %v268, 4
        %v276 = vadd.f32 %v268, %v275
        %v277 = vrot.slane %v276, 2
        %v278 = vadd.f32 %v276, %v277
        %v279 = vrot.slane %v278, 1
        %v280 = vadd.f32 %v278, %v279
        %v281 = vmul.f32 %v274, 0.125
        %v282 = vmul.f32 %v280, 0.125
        %v283 = vrsqrt.pop %v281
        %v284 = vmul.f32 %v281, %v283
        %vm285 = vcmp.eq.f32.partialorder %v281, inf
        %v286 = vsel %vm285, %v281, %v284
        %vm287 = vcmp.eq.f32.partialorder %v281, 0.0
        %v288 = vand.u32 %v281, 2147483648
        %v289 = vsel %vm287, %v288, %v286
        %v290 = vrsqrt.pop %v282
        %v291 = vmul.f32 %v282, %v290
        %vm292 = vcmp.eq.f32.partialorder %v282, inf
        %v293 = vsel %vm292, %v282, %v291
        %vm294 = vcmp.eq.f32.partialorder %v282, 0.0
        %v295 = vand.u32 %v282, 2147483648
        %v296 = vsel %vm294, %v295, %v293
        %v297 = vmul.f32 %v289, 0.00495
        %v298 = vmul.f32 %v296, 0.00495
        %v299 = vld [vmem:[%s256] sm:$0x3]
        %v301 = vlaneseq
        %v302 = vshrl.u32 %v301, 7
        %v303 = vsub.s32 0, %v302
        %v304 = vrot.slane %v299, %v303
        %v305 = vlaneseq
        %v306 = vshrl.u32 %v305, 7
        %v307 = vsub.s32 1, %v306
        %v308 = vrot.slane %v299, %v307
        %v311 = vmul.f32 %v297, %v304
        %v312 = vmul.f32 %v298, %v308
        %v313 = vld [vmem:[%s260] sm:$0x3]
        %v314 = vmul.f32 %v313, 0.0145
        %v315 = vadd.f32 %v281, %v311
        %v316 = vadd.f32 %v282, %v312
        %v318 = vlaneseq
        %v319 = vshrl.u32 %v318, 7
        %v320 = vsub.s32 0, %v319
        %v321 = vrot.slane %v314, %v320
        %v322 = vlaneseq
        %v323 = vshrl.u32 %v322, 7
        %v324 = vsub.s32 1, %v323
        %v325 = vrot.slane %v314, %v324
        %v328 = vadd.f32 %v315, %v321
        %v329 = vadd.f32 %v316, %v325
        %v330 = vmax.f32 %v328, 0.0
        %v331 = vmax.f32 %v329, 0.0
        %v332 = vmin.f32 %v330, 1.0
        %v333 = vmin.f32 %v331, 1.0
        %v336 = vcombine.low %v332, %v333
        %v338 = vunpack.c.l.s4 1966171168
        %v339 = vunpack.c.0.s8 %v338
        %v340 = vlaneseq
        %v341 = vshrl.u32 %v340, 7
        %v342 = vsub.s32 %v339, %v341
        %v343 = vrot.slane %v336, %v342
        %v345 = vunpack.c.l.s4 1966171168
        %v346 = vunpack.c.0.s8 %v345
        %v347 = vlaneseq
        %v348 = vshrl.u32 %v347, 7
        %v349 = vsub.s32 %v346, %v348
        %v350 = vrot.slane %v343, %v349
        %v352 = vlaneseq
        %vm353 = vcmp.ge.s32.totalorder %v352, 0
        %vm354 = vcmp.lt.s32.totalorder %v352, 256
        %vm355 = vmand %vm353, %vm354
        %356 = vst.msk [vmem:[%s252] sm:$0x3] %vm355, %v350
        %s357 = sand.u32 %s129, 1
        %s358 = scalar_lea.sflag [#allocation4], %s357
        %s359 = sand.u32 %s129, 1
        %s360 = smul.addr %s359, 2
        %s361 = scalar_lea.vmem [#allocation7], %s360
        // Predicated region
        $region45: #{tpu_custom_call.1} parent=35 // pred_check
          %p362 = pneg %p139
        $region46: #{tpu_custom_call.1} parent=35 // pred_check_branch
          %364 = sbr.rel (%p362) target = $region48
        $region47: #{tpu_custom_call.1} parent=35 // pred_region
          %s366 = ssub.s32 32, 32
          %367 = vsyncadd %s358, %s366
          %s368 = smul.addr %s22, 2
          %s369 = smul.addr %s368, 16
          %s370 = scalar_lea.hbm %s4, %s369
          %s372 = sshll.u32 %s361, 4
          %s373 = int_to_ptr.vmem [resolvable:$true] %s372
          %375 = dma.vmem_to_hbm [thread:$0]  %s373, 32, %s370, %s358
        $region48: #{tpu_custom_call.1} parent=35 // pred_fallthru
          _
      $region36: #{tpu_custom_call.1} parent=5 // pred_fallthru
        _
      %p376 = scmp.le.s32.totalorder 2, %s17
      // Predicated region
      $region49: #{tpu_custom_call.1} parent=5 // pred_check
        %p377 = pneg %p376
      $region50: #{tpu_custom_call.1} parent=5 // pred_check_branch
        %379 = sbr.rel (%p377) target = $region52
      $region51: #{tpu_custom_call.1} parent=5 // pred_region
        %s380 = ssub.s32 %s17, 2
        // Predicated region
        $region53: #{tpu_custom_call.1} parent=51 // pred_check
          %p381 = pneg %p145
        $region54: #{tpu_custom_call.1} parent=51 // pred_check_branch
          %383 = sbr.rel (%p381) target = $region56
        $region55: #{tpu_custom_call.1} parent=51 // pred_region
          %s384 = sand.u32 %s130, 1
          %s385 = scalar_lea.sflag [#allocation4], %s384
          %s386 = sand.u32 %s130, 1
          %s387 = smul.addr %s386, 2
          %s388 = scalar_lea.vmem [#allocation7], %s387
          %389 = dma.done %s385, 32
        $region56: #{tpu_custom_call.1} parent=51 // pred_fallthru
          _
      $region52: #{tpu_custom_call.1} parent=5 // pred_fallthru
        _
    $region6: #{tpu_custom_call.1} parent=1 // loop_footer
      %s21 = sadd.s32 1, %s17
    $region7: #{tpu_custom_call.1} parent=1 // loop_footer_branch
      %16 = sbr.rel target = $region3
    $region8: #{tpu_custom_call.1} parent=1 // loop_exit
      _
    %390 = vsyncpa [#allocation3], 1
    %s391 = scalar_lea.sflag [#allocation3], 1
    %392 = vsyncpa %s391, 1
    %393 = vsyncpa [#allocation6], 1
    %394 = vsyncpa [#allocation4], 1
    %s395 = scalar_lea.sflag [#allocation4], 1
    %396 = vsyncpa %s395, 1

</llo_original>
